<compile_context>
chip_gen: v5e
topology: v5e:2x2
jax: 0.10.0
libtpu: 0.0.40
codegen_flags: <defaults>
</compile_context>

<pallas_src>
import functools

import jax
import jax.numpy as jnp
from jax.experimental import pallas as pl
from jax.experimental.pallas import tpu as pltpu

LANES = 128
SUBLANES = 8


def _round_up(x, m):
    return ((x + m - 1) // m) * m


# -----------------------------------------------------------------------------
# Fused kernel factory: both MLP heads in one kernel body.
#   val_dims / pol_dims: per-layer tuples (k_in_padded, true_out_width, padded_out_width)
# -----------------------------------------------------------------------------
def _make_fused_prediction_kernel(val_dims, pol_dims):
    n_val = len(val_dims)
    n_pol = len(pol_dims)

    def _run_head(h, slab_refs, dims):
        n = len(dims)
        out = None
        for l, (k, d_true, _d_pad) in enumerate(dims):
            slab = slab_refs[l]
            r_w = _round_up(k, SUBLANES)          # bias/gamma/beta block starts tile-aligned
            w = slab[0:k, :]                      # (k, d_pad) — pad rows are zero
            b = slab[r_w:r_w + 1, :]              # Linear bias
            y = jnp.dot(h, w, preferred_element_type=jnp.float32) + b
            if l == n - 1:                        # final Linear (use_value_out=True: no act/LN)
                out = y
                break
            gamma = slab[r_w + 1:r_w + 2, :]
            beta = slab[r_w + 2:r_w + 3, :]
            y = jnp.maximum(y, 0.0)               # ReLU
            # LayerNorm, PyTorch semantics (biased variance, eps=1e-5 inside rsqrt).
            # Pad lanes of y are exactly 0, so the two independent reductions only see the
            # true features; divide by the TRUE width, not the padded one.
            inv_n = 1.0 / float(d_true)
            mean = jnp.sum(y, axis=-1, keepdims=True) * inv_n
            mean_sq = jnp.sum(y * y, axis=-1, keepdims=True) * inv_n
            var = jnp.maximum(mean_sq - mean * mean, 0.0)
            h = (y - mean) * jax.lax.rsqrt(var + 1e-5) * gamma + beta
        return out

    def kernel(xv_ref, xp_ref, *refs):
        val_slabs = refs[:n_val]
        pol_slabs = refs[n_val:n_val + n_pol]
        value_out_ref = refs[n_val + n_pol]
        policy_out_ref = refs[n_val + n_pol + 1]

        # Value head over the concatenated agent state (bt, num_agents*H).
        value = _run_head(xv_ref[...].astype(jnp.float32), val_slabs, val_dims)
        value_out_ref[...] = value.astype(value_out_ref.dtype)

        # Policy head over ALL agent rows at once (bt*num_agents, H): a single sublane-dense
        # matmul instead of num_agents tiny, lane-sliced ones.
        logits = _run_head(xp_ref[...].astype(jnp.float32), pol_slabs, pol_dims)
        policy_out_ref[...] = logits.astype(policy_out_ref.dtype)

    return kernel


# -----------------------------------------------------------------------------
# Forward wrapper: one pallas_call for the whole network.
# -----------------------------------------------------------------------------
def fused_prediction_forward(val_slabs, pol_slabs, x, *,
                             num_agents, hidden_state_size,
                             val_dims, pol_dims,
                             full_support_size, action_space_size):
    B, D = x.shape
    H = hidden_state_size
    assert D == num_agents * H
    v_pad = val_dims[-1][2]
    a_pad = pol_dims[-1][2]

    # ---- batch tiling -------------------------------------------------------
    # (a) pad B to the f32 sublane multiple, (b) pick bt so the grid has >= 2 steps whenever
    # B allows (both v7x TensorCores fed via the "parallel" axis), (c) cap bt so that the
    # double-buffered streaming blocks + (double-buffered) weights stay well under the scoped
    # VMEM limit on every TPU generation.
    B8 = _round_up(max(B, 1), SUBLANES)
    if B8 <= SUBLANES:
        bt = B8
    else:
        bt = min(256, _round_up(-(-B8 // 2), SUBLANES))

    all_slabs = tuple(val_slabs) + tuple(pol_slabs)
    weight_bytes = sum(int(s.size) * 4 for s in all_slabs)

    def vmem_bytes(bt_):
        per_row = (D + num_agents * H + v_pad + num_agents * a_pad) * 4
        return 2 * bt_ * per_row + 2 * weight_bytes

    budget = 20 * 1024 * 1024
    while bt > SUBLANES and vmem_bytes(bt) > budget:
        bt = _round_up(bt // 2, SUBLANES)

    B_pad = _round_up(B8, bt)
    grid = (B_pad // bt,)

    if B_pad != B:
        x = jnp.pad(x, ((0, B_pad - B), (0, 0)))
    x_pol = x.reshape(B_pad * num_agents, H)      # free row-major view of the same HBM data

    kernel = _make_fused_prediction_kernel(val_dims, pol_dims)

    weight_specs = [pl.BlockSpec(s.shape, lambda i: (0, 0)) for s in all_slabs]
    in_specs = ([pl.BlockSpec((bt, D), lambda i: (i, 0)),
                 pl.BlockSpec((bt * num_agents, H), lambda i: (i, 0))]
                + weight_specs)
    out_specs = (pl.BlockSpec((bt, v_pad), lambda i: (i, 0)),
                 pl.BlockSpec((bt * num_agents, a_pad), lambda i: (i, 0)))
    out_shape = (jax.ShapeDtypeStruct((B_pad, v_pad), jnp.float32),
                 jax.ShapeDtypeStruct((B_pad * num_agents, a_pad), jnp.float32))

    value_padded, policy_padded = pl.pallas_call(
        kernel,
        out_shape=out_shape,
        grid=grid,
        in_specs=in_specs,
        out_specs=out_specs,
        compiler_params=pltpu.CompilerParams(
            dimension_semantics=("parallel",),
            vmem_limit_bytes=32 * 1024 * 1024),
    )(x, x_pol, *val_slabs, *pol_slabs)

    value = value_padded[:B, :full_support_size]
    policy_logit = policy_padded.reshape(B_pad, num_agents, a_pad)[:B, :, :action_space_size]
    return policy_logit, value


# -----------------------------------------------------------------------------
# Parameter construction: mirrors mlp(..., use_value_out=True)
#   [Linear, ReLU, LayerNorm] * len(layer_sizes)  +  final Linear
# Orthogonal init with ReLU gain, zero bias, LN gamma=1 / beta=0.
# Each layer's W / bias / gamma / beta are packed into ONE 128-lane-padded slab:
#   rows [0 : k_in)                weight (zero rows for padded-input lanes)
#   rows [r_w : r_w+8)             row 0 = bias, row 1 = LN gamma, row 2 = LN beta, rest 0
# Also returns the raw (unpadded) weights for the pure-JAX reference.
# -----------------------------------------------------------------------------
def make_head_params(key, input_size, layer_sizes, output_size, out_pad):
    gain = 2.0 ** 0.5                               # nn.init.calculate_gain('relu')
    ortho = jax.nn.initializers.orthogonal(scale=1.0)
    sizes = [input_size] + list(layer_sizes) + [output_size]
    slabs, dims, raw = [], [], []
    k_in = input_size                               # (padded) activation width fed to layer
    for i in range(len(sizes) - 1):
        d_in_true = sizes[i]
        d_out = sizes[i + 1]
        is_final = i == len(sizes) - 2
        d_out_p = out_pad if is_final else _round_up(d_out, LANES)
        key, sub = jax.random.split(key)
        # PyTorch weight is (out, in); orthogonal init there, then transpose to (in, out).
        w = (ortho(sub, (d_out, d_in_true), jnp.float32) * gain).T
        r_w = _round_up(k_in, SUBLANES)
        slab = jnp.zeros((r_w + SUBLANES, d_out_p), jnp.float32)
        slab = slab.at[:d_in_true, :d_out].set(w)
        if not is_final:
            slab = slab.at[r_w + 1, :d_out].set(1.0)   # LN gamma (pad lanes stay 0)
        slabs.append(slab)
        dims.append((k_in, d_out, d_out_p))
        raw.append(w)
        k_in = d_out_p
    return tuple(slabs), tuple(dims), raw


# -----------------------------------------------------------------------------
# PredictionNetwork
# -----------------------------------------------------------------------------
class PredictionNetwork:
    def __init__(self, key, num_agents, hidden_state_size, action_space_size,
                 fc_value_layers, fc_policy_layers, full_support_size):
        self.num_agents = num_agents
        self.hidden_state_size = hidden_state_size
        self.action_space_size = action_space_size
        self.full_support_size = full_support_size

        kv, kp = jax.random.split(key)
        v_pad = _round_up(full_support_size, LANES)
        a_pad = _round_up(action_space_size, LANES)
        self.val_slabs, self.val_dims, self.val_raw = make_head_params(
            kv, hidden_state_size * num_agents, fc_value_layers, full_support_size, v_pad)
        self.pol_slabs, self.pol_dims, self.pol_raw = make_head_params(
            kp, hidden_state_size, fc_policy_layers, action_space_size, a_pad)

        self._fwd = jax.jit(functools.partial(
            fused_prediction_forward,
            num_agents=num_agents,
            hidden_state_size=hidden_state_size,
            val_dims=self.val_dims,
            pol_dims=self.pol_dims,
            full_support_size=full_support_size,
            action_space_size=action_space_size))

    def __call__(self, x):
        return self._fwd(self.val_slabs, self.pol_slabs, x)


# -----------------------------------------------------------------------------
# Pure-JAX reference using the raw (unpadded) weights: independently verifies the
# slab packing / lane padding / true-width LayerNorm inside the kernel.
# -----------------------------------------------------------------------------
def ref_head(raw_ws, x):
    n = len(raw_ws)
    h = x
    for l, w in enumerate(raw_ws):
        y = h @ w                                       # bias initialised to 0
        if l == n - 1:
            return y
        y = jnp.maximum(y, 0.0)
        mean = jnp.mean(y, axis=-1, keepdims=True)
        var = jnp.mean((y - mean) ** 2, axis=-1, keepdims=True)
        h = (y - mean) / jnp.sqrt(var + 1e-5)           # gamma=1, beta=0 at init
    return h


if __name__ == "__main__":
    key = jax.random.PRNGKey(0)
    k_param, k_x = jax.random.split(key)

    batch = 2
    num_agents = 4
    hidden_state_size = 32
    action_space_size = 8
    fc_value_layers = [64]
    fc_policy_layers = [32]
    full_support_size = 16

    net = PredictionNetwork(k_param, num_agents, hidden_state_size,
                            action_space_size, fc_value_layers,
                            fc_policy_layers, full_support_size)

    # input: concatenated agent hidden states, shape (B, num_agents * hidden_state_size)
    x = jax.random.normal(k_x, (batch, num_agents * hidden_state_size), jnp.float32)

    policy_logit, value = net(x)
    policy_logit = jax.block_until_ready(policy_logit)
    value = jax.block_until_ready(value)

    assert policy_logit.shape == (batch, num_agents, action_space_size)
    assert value.shape == (batch, full_support_size)

    # compare against the pure-JAX reference
    value_ref = ref_head(net.val_raw, x)
    policy_ref = ref_head(net.pol_raw, x.reshape(-1, hidden_state_size))
    policy_ref = policy_ref.reshape(batch, num_agents, action_space_size)

    assert jnp.allclose(value, value_ref, atol=1e-4, rtol=1e-4)
    assert jnp.allclose(policy_logit, policy_ref, atol=1e-4, rtol=1e-4)

    print("KERNEL_OK")
</pallas_src>

<mosaic_0001>
module attributes {stable_mosaic.version = 11 : i64} {
  func.func @kernel(%arg0: i32, %arg1: memref<8x128xf32, #tpu.memory_space<vmem>>, %arg2: memref<32x32xf32, #tpu.memory_space<vmem>>, %arg3: memref<136x128xf32, #tpu.memory_space<vmem>>, %arg4: memref<136x128xf32, #tpu.memory_space<vmem>>, %arg5: memref<40x128xf32, #tpu.memory_space<vmem>>, %arg6: memref<136x128xf32, #tpu.memory_space<vmem>>, %arg7: memref<8x128xf32, #tpu.memory_space<vmem>>, %arg8: memref<32x128xf32, #tpu.memory_space<vmem>>) attributes {dimension_semantics = [#tpu.dimension_semantics<parallel>], iteration_bounds = array<i64: 1>, scalar_prefetch = 0 : i64, scratch_operands = 0 : i64, tpu.core_type = #tpu.core_type<tc>, window_params = [{transform_indices = @transform_0, window_bounds = array<i64: 8, 128>}, {transform_indices = @transform_1, window_bounds = array<i64: 32, 32>}, {pipeline_mode = #tpu.pipeline_mode<synchronous>, transform_indices = @transform_2, window_bounds = array<i64: 136, 128>}, {pipeline_mode = #tpu.pipeline_mode<synchronous>, transform_indices = @transform_3, window_bounds = array<i64: 136, 128>}, {pipeline_mode = #tpu.pipeline_mode<synchronous>, transform_indices = @transform_4, window_bounds = array<i64: 40, 128>}, {pipeline_mode = #tpu.pipeline_mode<synchronous>, transform_indices = @transform_5, window_bounds = array<i64: 136, 128>}, {transform_indices = @transform_6, window_bounds = array<i64: 8, 128>}, {transform_indices = @transform_7, window_bounds = array<i64: 32, 128>}]} {
    %c0 = arith.constant 0 : index
    %c0_0 = arith.constant 0 : index
    %0 = vector.load %arg1[%c0, %c0_0] : memref<8x128xf32, #tpu.memory_space<vmem>>, vector<8x128xf32>
    %c0_1 = arith.constant 0 : index
    %c0_2 = arith.constant 0 : index
    %1 = vector.load %arg3[%c0_1, %c0_2] : memref<136x128xf32, #tpu.memory_space<vmem>>, vector<128x128xf32>
    %c128 = arith.constant 128 : index
    %c0_3 = arith.constant 0 : index
    %2 = vector.load %arg3[%c128, %c0_3] : memref<136x128xf32, #tpu.memory_space<vmem>>, vector<1x128xf32>
    %cst = arith.constant dense<0.000000e+00> : vector<8x128xf32>
    %3 = tpu.matmul %0, %1, %cst {dimension_numbers = #tpu.dot_dimension_numbers<[1], [0], [0], [1], [0, 0, 1, 1], [], []>} : vector<8x128xf32>, vector<128x128xf32>, vector<8x128xf32> -> vector<8x128xf32>
    %4 = vector.broadcast %2 : vector<1x128xf32> to vector<8x128xf32>
    %5 = arith.addf %3, %4 : vector<8x128xf32>
    %c129 = arith.constant 129 : index
    %c0_4 = arith.constant 0 : index
    %6 = vector.load %arg3[%c129, %c0_4] : memref<136x128xf32, #tpu.memory_space<vmem>>, vector<1x128xf32>
    %c130 = arith.constant 130 : index
    %c0_5 = arith.constant 0 : index
    %7 = vector.load %arg3[%c130, %c0_5] : memref<136x128xf32, #tpu.memory_space<vmem>>, vector<1x128xf32>
    %cst_6 = arith.constant 0.000000e+00 : f32
    %8 = vector.broadcast %cst_6 : f32 to vector<8x128xf32>
    %9 = arith.maximumf %5, %8 : vector<8x128xf32>
    %cst_7 = arith.constant dense<0.000000e+00> : vector<8xf32>
    %10 = vector.multi_reduction <add>, %9, %cst_7 [1] : vector<8x128xf32> to vector<8xf32>
    %11 = vector.shape_cast %10 : vector<8xf32> to vector<8x1xf32>
    %cst_8 = arith.constant 1.562500e-02 : f32
    %12 = vector.broadcast %cst_8 : f32 to vector<8x1xf32>
    %13 = arith.mulf %11, %12 : vector<8x1xf32>
    %14 = arith.mulf %9, %9 : vector<8x128xf32>
    %cst_9 = arith.constant dense<0.000000e+00> : vector<8xf32>
    %15 = vector.multi_reduction <add>, %14, %cst_9 [1] : vector<8x128xf32> to vector<8xf32>
    %16 = vector.shape_cast %15 : vector<8xf32> to vector<8x1xf32>
    %cst_10 = arith.constant 1.562500e-02 : f32
    %17 = vector.broadcast %cst_10 : f32 to vector<8x1xf32>
    %18 = arith.mulf %16, %17 : vector<8x1xf32>
    %19 = arith.mulf %13, %13 : vector<8x1xf32>
    %20 = arith.subf %18, %19 : vector<8x1xf32>
    %cst_11 = arith.constant 0.000000e+00 : f32
    %21 = vector.broadcast %cst_11 : f32 to vector<8x1xf32>
    %22 = arith.maximumf %20, %21 : vector<8x1xf32>
    %23 = vector.broadcast %13 : vector<8x1xf32> to vector<8x128xf32>
    %24 = arith.subf %9, %23 : vector<8x128xf32>
    %cst_12 = arith.constant 9.99999974E-6 : f32
    %25 = vector.broadcast %cst_12 : f32 to vector<8x1xf32>
    %26 = arith.addf %22, %25 : vector<8x1xf32>
    %27 = math.rsqrt %26 : vector<8x1xf32>
    %28 = vector.broadcast %27 : vector<8x1xf32> to vector<8x128xf32>
    %29 = arith.mulf %24, %28 : vector<8x128xf32>
    %30 = vector.broadcast %6 : vector<1x128xf32> to vector<8x128xf32>
    %31 = arith.mulf %29, %30 : vector<8x128xf32>
    %32 = vector.broadcast %7 : vector<1x128xf32> to vector<8x128xf32>
    %33 = arith.addf %31, %32 : vector<8x128xf32>
    %c0_13 = arith.constant 0 : index
    %c0_14 = arith.constant 0 : index
    %34 = vector.load %arg4[%c0_13, %c0_14] : memref<136x128xf32, #tpu.memory_space<vmem>>, vector<128x128xf32>
    %c128_15 = arith.constant 128 : index
    %c0_16 = arith.constant 0 : index
    %35 = vector.load %arg4[%c128_15, %c0_16] : memref<136x128xf32, #tpu.memory_space<vmem>>, vector<1x128xf32>
    %cst_17 = arith.constant dense<0.000000e+00> : vector<8x128xf32>
    %36 = tpu.matmul %33, %34, %cst_17 {dimension_numbers = #tpu.dot_dimension_numbers<[1], [0], [0], [1], [0, 0, 1, 1], [], []>} : vector<8x128xf32>, vector<128x128xf32>, vector<8x128xf32> -> vector<8x128xf32>
    %37 = vector.broadcast %35 : vector<1x128xf32> to vector<8x128xf32>
    %38 = arith.addf %36, %37 : vector<8x128xf32>
    %c0_18 = arith.constant 0 : index
    %c0_19 = arith.constant 0 : index
    %39 = vector.load %arg7[%c0_18, %c0_19] : memref<8x128xf32, #tpu.memory_space<vmem>>, vector<8x128xf32>
    tpu.vector_store %arg7[%c0_18, %c0_19], %38 {strides = array<i32>} : memref<8x128xf32, #tpu.memory_space<vmem>>, vector<8x128xf32>,
    %c0_20 = arith.constant 0 : index
    %c0_21 = arith.constant 0 : index
    %40 = vector.load %arg2[%c0_20, %c0_21] : memref<32x32xf32, #tpu.memory_space<vmem>>, vector<32x32xf32>
    %c0_22 = arith.constant 0 : index
    %c0_23 = arith.constant 0 : index
    %41 = vector.load %arg5[%c0_22, %c0_23] : memref<40x128xf32, #tpu.memory_space<vmem>>, vector<32x128xf32>
    %c32 = arith.constant 32 : index
    %c0_24 = arith.constant 0 : index
    %42 = vector.load %arg5[%c32, %c0_24] : memref<40x128xf32, #tpu.memory_space<vmem>>, vector<1x128xf32>
    %cst_25 = arith.constant dense<0.000000e+00> : vector<32x128xf32>
    %43 = tpu.matmul %40, %41, %cst_25 {dimension_numbers = #tpu.dot_dimension_numbers<[1], [0], [0], [1], [0, 0, 1, 1], [], []>} : vector<32x32xf32>, vector<32x128xf32>, vector<32x128xf32> -> vector<32x128xf32>
    %44 = vector.broadcast %42 : vector<1x128xf32> to vector<32x128xf32>
    %45 = arith.addf %43, %44 : vector<32x128xf32>
    %c33 = arith.constant 33 : index
    %c0_26 = arith.constant 0 : index
    %46 = vector.load %arg5[%c33, %c0_26] : memref<40x128xf32, #tpu.memory_space<vmem>>, vector<1x128xf32>
    %c34 = arith.constant 34 : index
    %c0_27 = arith.constant 0 : index
    %47 = vector.load %arg5[%c34, %c0_27] : memref<40x128xf32, #tpu.memory_space<vmem>>, vector<1x128xf32>
    %cst_28 = arith.constant 0.000000e+00 : f32
    %48 = vector.broadcast %cst_28 : f32 to vector<32x128xf32>
    %49 = arith.maximumf %45, %48 : vector<32x128xf32>
    %cst_29 = arith.constant dense<0.000000e+00> : vector<32xf32>
    %50 = vector.multi_reduction <add>, %49, %cst_29 [1] : vector<32x128xf32> to vector<32xf32>
    %51 = vector.shape_cast %50 : vector<32xf32> to vector<32x1xf32>
    %cst_30 = arith.constant 3.125000e-02 : f32
    %52 = vector.broadcast %cst_30 : f32 to vector<32x1xf32>
    %53 = arith.mulf %51, %52 : vector<32x1xf32>
    %54 = arith.mulf %49, %49 : vector<32x128xf32>
    %cst_31 = arith.constant dense<0.000000e+00> : vector<32xf32>
    %55 = vector.multi_reduction <add>, %54, %cst_31 [1] : vector<32x128xf32> to vector<32xf32>
    %56 = vector.shape_cast %55 : vector<32xf32> to vector<32x1xf32>
    %cst_32 = arith.constant 3.125000e-02 : f32
    %57 = vector.broadcast %cst_32 : f32 to vector<32x1xf32>
    %58 = arith.mulf %56, %57 : vector<32x1xf32>
    %59 = arith.mulf %53, %53 : vector<32x1xf32>
    %60 = arith.subf %58, %59 : vector<32x1xf32>
    %cst_33 = arith.constant 0.000000e+00 : f32
    %61 = vector.broadcast %cst_33 : f32 to vector<32x1xf32>
    %62 = arith.maximumf %60, %61 : vector<32x1xf32>
    %63 = vector.broadcast %53 : vector<32x1xf32> to vector<32x128xf32>
    %64 = arith.subf %49, %63 : vector<32x128xf32>
    %cst_34 = arith.constant 9.99999974E-6 : f32
    %65 = vector.broadcast %cst_34 : f32 to vector<32x1xf32>
    %66 = arith.addf %62, %65 : vector<32x1xf32>
    %67 = math.rsqrt %66 : vector<32x1xf32>
    %68 = vector.broadcast %67 : vector<32x1xf32> to vector<32x128xf32>
    %69 = arith.mulf %64, %68 : vector<32x128xf32>
    %70 = vector.broadcast %46 : vector<1x128xf32> to vector<32x128xf32>
    %71 = arith.mulf %69, %70 : vector<32x128xf32>
    %72 = vector.broadcast %47 : vector<1x128xf32> to vector<32x128xf32>
    %73 = arith.addf %71, %72 : vector<32x128xf32>
    %c0_35 = arith.constant 0 : index
    %c0_36 = arith.constant 0 : index
    %74 = vector.load %arg6[%c0_35, %c0_36] : memref<136x128xf32, #tpu.memory_space<vmem>>, vector<128x128xf32>
    %c128_37 = arith.constant 128 : index
    %c0_38 = arith.constant 0 : index
    %75 = vector.load %arg6[%c128_37, %c0_38] : memref<136x128xf32, #tpu.memory_space<vmem>>, vector<1x128xf32>
    %cst_39 = arith.constant dense<0.000000e+00> : vector<32x128xf32>
    %76 = tpu.matmul %73, %74, %cst_39 {dimension_numbers = #tpu.dot_dimension_numbers<[1], [0], [0], [1], [0, 0, 1, 1], [], []>} : vector<32x128xf32>, vector<128x128xf32>, vector<32x128xf32> -> vector<32x128xf32>
    %77 = vector.broadcast %75 : vector<1x128xf32> to vector<32x128xf32>
    %78 = arith.addf %76, %77 : vector<32x128xf32>
    %c0_40 = arith.constant 0 : index
    %c0_41 = arith.constant 0 : index
    %79 = vector.load %arg8[%c0_40, %c0_41] : memref<32x128xf32, #tpu.memory_space<vmem>>, vector<32x128xf32>
    tpu.vector_store %arg8[%c0_40, %c0_41], %78 {strides = array<i32>} : memref<32x128xf32, #tpu.memory_space<vmem>>, vector<32x128xf32>,
    return
  }
  func.func @transform_0(%arg0: i32) -> (i32, i32) {
    %c0_i32 = arith.constant 0 : i32
    %c0_i32_0 = arith.constant 0 : i32
    return %arg0, %c0_i32 : i32, i32
  }
  func.func @transform_1(%arg0: i32) -> (i32, i32) {
    %c0_i32 = arith.constant 0 : i32
    %c0_i32_0 = arith.constant 0 : i32
    return %arg0, %c0_i32 : i32, i32
  }
  func.func @transform_2(%arg0: i32) -> (i32, i32) {
    %c0_i32 = arith.constant 0 : i32
    %c0_i32_0 = arith.constant 0 : i32
    %c0_i32_1 = arith.constant 0 : i32
    return %c0_i32, %c0_i32_0 : i32, i32
  }
  func.func @transform_3(%arg0: i32) -> (i32, i32) {
    %c0_i32 = arith.constant 0 : i32
    %c0_i32_0 = arith.constant 0 : i32
    %c0_i32_1 = arith.constant 0 : i32
    return %c0_i32, %c0_i32_0 : i32, i32
  }
  func.func @transform_4(%arg0: i32) -> (i32, i32) {
    %c0_i32 = arith.constant 0 : i32
    %c0_i32_0 = arith.constant 0 : i32
    %c0_i32_1 = arith.constant 0 : i32
    return %c0_i32, %c0_i32_0 : i32, i32
  }
  func.func @transform_5(%arg0: i32) -> (i32, i32) {
    %c0_i32 = arith.constant 0 : i32
    %c0_i32_0 = arith.constant 0 : i32
    %c0_i32_1 = arith.constant 0 : i32
    return %c0_i32, %c0_i32_0 : i32, i32
  }
  func.func @transform_6(%arg0: i32) -> (i32, i32) {
    %c0_i32 = arith.constant 0 : i32
    %c0_i32_0 = arith.constant 0 : i32
    return %arg0, %c0_i32 : i32, i32
  }
  func.func @transform_7(%arg0: i32) -> (i32, i32) {
    %c0_i32 = arith.constant 0 : i32
    %c0_i32_0 = arith.constant 0 : i32
    return %arg0, %c0_i32 : i32, i32
  }
}

</mosaic_0001>

<llo_original>
// kernel: fused_prediction_forward.1
$region0: #{fused_prediction_forward.1}
  #allocation0 [shape = 'u32[]', space=smem, size = 0x4, offset = 0x4, fixed_abs, tag = 'smem constant byte address 0x4 - core index']
  #allocation1 [shape = 'u32[72,128]{1,0:T(1,128)}', space=vmem, size = 0x9000, scoped, tag = 'internal scratch']
  %s0 = inlined_call_operand.vmem [shape: f32[8,128], index: 0, kind: input, shape index: {}]
  %s1 = inlined_call_operand.vmem [shape: f32[32,32], index: 1, kind: input, shape index: {}]
  %s2 = inlined_call_operand.hbm [shape: f32[136,128], index: 2, kind: input, shape index: {}]
  %s3 = inlined_call_operand.hbm [shape: f32[136,128], index: 3, kind: input, shape index: {}]
  %s4 = inlined_call_operand.vmem [shape: f32[40,128], index: 4, kind: input, shape index: {}]
  %s5 = inlined_call_operand.hbm [shape: f32[136,128], index: 5, kind: input, shape index: {}]
  %s6 = inlined_call_operand.vmem [shape: f32[8,128], index: 6, kind: output, shape index: {0}]
  %s7 = inlined_call_operand.vmem [shape: f32[32,128], index: 7, kind: output, shape index: {1}]
  %8 = xla_tuple %s6, %s7
  %s9 = sld [smem:[#allocation0]]
  $region54: #{fused_prediction_forward.1} parent=0
    _
  %s11 = ssub.s32 1, %s9
  %s12 = scalar_select 0, %s11, %s9
  $region1: #{fused_prediction_forward.1} parent=0
    #allocation2 [shape = 'u8[69632]{0}', space=vmem, size = 0x11000, scoped, tag = 'input window, operand 2, single buffered']
    #allocation3 [shape = 's32[1]{0}', space=sflag, size = 0x4, scoped, tag = 'scoped memory for fused_prediction_forward.1']
    #allocation4 [shape = 'u8[69632]{0}', space=vmem, size = 0x11000, scoped, tag = 'input window, operand 3, single buffered']
    #allocation5 [shape = 's32[1]{0}', space=sflag, size = 0x4, scoped, tag = 'scoped memory for fused_prediction_forward.1']
    #allocation6 [shape = 'u8[69632]{0}', space=vmem, size = 0x11000, scoped, tag = 'input window, operand 5, single buffered']
    %13 = vsyncpa [#allocation3], 0
    %14 = vsyncpa [#allocation5], 0
    // Predicated region
    $region2: #{fused_prediction_forward.1} parent=1 // pred_check
      _
    $region3: #{fused_prediction_forward.1} parent=1 // pred_check_branch
      %16 = sbr.rel (0) target = $region5
    $region4: #{fused_prediction_forward.1} parent=1 // pred_region
      _
    $region5: #{fused_prediction_forward.1} parent=1 // pred_fallthru
      _
    // Predicated region
    $region6: #{fused_prediction_forward.1} parent=1 // pred_check
      _
    $region7: #{fused_prediction_forward.1} parent=1 // pred_check_branch
      %18 = sbr.rel (0) target = $region9
    $region8: #{fused_prediction_forward.1} parent=1 // pred_region
      _
    $region9: #{fused_prediction_forward.1} parent=1 // pred_fallthru
      _
    // Predicated region
    $region10: #{fused_prediction_forward.1} parent=1 // pred_check
      _
    $region11: #{fused_prediction_forward.1} parent=1 // pred_check_branch
      %20 = sbr.rel (0) target = $region13
    $region12: #{fused_prediction_forward.1} parent=1 // pred_region
      %22 = vsyncadd [#allocation3], 0
      %s23 = sshll.u32 %s2, 4
      %s24 = int_to_ptr.hbm [resolvable:$true] %s23
      %s25 = sshll.u32 [#allocation2], 4
      %s26 = int_to_ptr.vmem [resolvable:$true] %s25
      %31 = dma.hbm_to_vmem [thread:$0]  %s24, 2176, %s26, [#allocation3], 128, 128, 8
    $region13: #{fused_prediction_forward.1} parent=1 // pred_fallthru
      _
    // Predicated region
    $region14: #{fused_prediction_forward.1} parent=1 // pred_check
      _
    $region15: #{fused_prediction_forward.1} parent=1 // pred_check_branch
      %33 = sbr.rel (0) target = $region17
    $region16: #{fused_prediction_forward.1} parent=1 // pred_region
      %35 = vsyncadd [#allocation5], 0
      %s36 = sshll.u32 %s3, 4
      %s37 = int_to_ptr.hbm [resolvable:$true] %s36
      %s38 = sshll.u32 [#allocation4], 4
      %s39 = int_to_ptr.vmem [resolvable:$true] %s38
      %44 = dma.hbm_to_vmem [thread:$0]  %s37, 2176, %s39, [#allocation5], 128, 128, 8
    $region17: #{fused_prediction_forward.1} parent=1 // pred_fallthru
      _
    // Predicated region
    $region18: #{fused_prediction_forward.1} parent=1 // pred_check
      _
    $region19: #{fused_prediction_forward.1} parent=1 // pred_check_branch
      %46 = sbr.rel (0) target = $region21
    $region20: #{fused_prediction_forward.1} parent=1 // pred_region
      _
    $region21: #{fused_prediction_forward.1} parent=1 // pred_fallthru
      _
    // Predicated region
    $region22: #{fused_prediction_forward.1} parent=1 // pred_check
      _
    $region23: #{fused_prediction_forward.1} parent=1 // pred_check_branch
      %48 = sbr.rel (0) target = $region25
    $region24: #{fused_prediction_forward.1} parent=1 // pred_region
      %50 = vsyncadd [#allocation5], 0
      %s51 = sshll.u32 %s5, 4
      %s52 = int_to_ptr.hbm [resolvable:$true] %s51
      %s53 = sshll.u32 [#allocation6], 4
      %s54 = int_to_ptr.vmem [resolvable:$true] %s53
      %59 = dma.hbm_to_vmem [thread:$0]  %s52, 2176, %s54, [#allocation5], 128, 128, 8
    $region25: #{fused_prediction_forward.1} parent=1 // pred_fallthru
      _
    // Predicated region
    $region26: #{fused_prediction_forward.1} parent=1 // pred_check
      _
    $region27: #{fused_prediction_forward.1} parent=1 // pred_check_branch
      %61 = sbr.rel (0) target = $region29
    $region28: #{fused_prediction_forward.1} parent=1 // pred_region
      %63 = dma.done [#allocation3], 2176
    $region29: #{fused_prediction_forward.1} parent=1 // pred_fallthru
      _
    // Predicated region
    $region30: #{fused_prediction_forward.1} parent=1 // pred_check
      _
    $region31: #{fused_prediction_forward.1} parent=1 // pred_check_branch
      %65 = sbr.rel (0) target = $region33
    $region32: #{fused_prediction_forward.1} parent=1 // pred_region
      %67 = dma.done [#allocation5], 2176
    $region33: #{fused_prediction_forward.1} parent=1 // pred_fallthru
      _
    // Predicated region
    $region34: #{fused_prediction_forward.1} parent=1 // pred_check
      _
    $region35: #{fused_prediction_forward.1} parent=1 // pred_check_branch
      %69 = sbr.rel (0) target = $region37
    $region36: #{fused_prediction_forward.1} parent=1 // pred_region
      %71 = dma.done [#allocation5], 2176
    $region37: #{fused_prediction_forward.1} parent=1 // pred_fallthru
      _
    %v72 = vld [vmem:[%s0] sm:$0xff]
    %v73 = vld [vmem:[#allocation2] sm:$0xff]
    %v74 = vld [vmem:[#allocation2 + $0x8] sm:$0xff]
    %v75 = vld [vmem:[#allocation2 + $0x10] sm:$0xff]
    %v76 = vld [vmem:[#allocation2 + $0x18] sm:$0xff]
    %v77 = vld [vmem:[#allocation2 + $0x20] sm:$0xff]
    %v78 = vld [vmem:[#allocation2 + $0x28] sm:$0xff]
    %v79 = vld [vmem:[#allocation2 + $0x30] sm:$0xff]
    %v80 = vld [vmem:[#allocation2 + $0x38] sm:$0xff]
    %v81 = vld [vmem:[#allocation2 + $0x40] sm:$0xff]
    %v82 = vld [vmem:[#allocation2 + $0x48] sm:$0xff]
    %v83 = vld [vmem:[#allocation2 + $0x50] sm:$0xff]
    %v84 = vld [vmem:[#allocation2 + $0x58] sm:$0xff]
    %v85 = vld [vmem:[#allocation2 + $0x60] sm:$0xff]
    %v86 = vld [vmem:[#allocation2 + $0x68] sm:$0xff]
    %v87 = vld [vmem:[#allocation2 + $0x70] sm:$0xff]
    %v88 = vld [vmem:[#allocation2 + $0x78] sm:$0xff]
    %v89 = vld [vmem:[#allocation2 + $0x80] sm:$0x1]
    %v90 = vperm.slane %v89, 0
    %91 = vmatpush.msra.mxu0 %v88
    %92 = vmatpush.msra.mxu0 %v87
    %93 = vmatpush.msra.mxu0 %v86
    %94 = vmatpush.msra.mxu0 %v85
    %95 = vmatpush.msra.mxu0 %v84
    %96 = vmatpush.msra.mxu0 %v83
    %97 = vmatpush.msra.mxu0 %v82
    %98 = vmatpush.msra.mxu0 %v81
    %99 = vmatpush.msra.mxu0 %v80
    %100 = vmatpush.msra.mxu0 %v79
    %101 = vmatpush.msra.mxu0 %v78
    %102 = vmatpush.msra.mxu0 %v77
    %103 = vmatpush.msra.mxu0 %v76
    %104 = vmatpush.msra.mxu0 %v75
    %105 = vmatpush.msra.mxu0 %v74
    %106 = vmatpush.msra.mxu0 %v73
    %107 = vmatmul.f32.gmra.mxu0 %v72
    %v108 = vpop.f32.mrf.mxu0
    %v109 = vadd.f32 %v90, %v108
    %110 = vdwg.mxu0
    %v111 = vld [vmem:[#allocation2 + $0x81] sm:$0x1]
    %v112 = vld [vmem:[#allocation2 + $0x82] sm:$0x1]
    %v113 = vmax.f32 %v109, 0.0
    %114 = vadd.xlane.f32.xlu0 %v113
    %v115 = vpop.xlane.xlu0 %114
    %v116 = vmul.f32 %v115, 0.015625
    %v117 = vmul.f32 %v113, %v113
    %118 = vadd.xlane.f32.xlu0 %v117
    %v119 = vpop.xlane.xlu0 %118
    %v120 = vmul.f32 %v119, 0.015625
    %v121 = vmul.f32 %v116, %v116
    %v122 = vsub.f32 %v120, %v121
    %v123 = vmax.f32 %v122, 0.0
    %v124 = vsub.f32 %v113, %v116
    %v125 = vadd.f32 %v123, 1e-05
    %v126 = vrsqrt.pop %v125
    %v127 = vmul.f32 %v126, %v125
    %v128 = vmul.f32 %v127, %v126
    %v129 = vmul.f32 0.5, %v128
    %v130 = vsub.f32 1.5, %v129
    %v131 = vmul.f32 %v126, %v130
    %vm132 = vweird.f32 %v125
    %vm133 = vweird.f32 %v126
    %vm134 = vmor %vm132, %vm133
    %v135 = vsel %vm134, %v126, %v131
    %v136 = vmul.f32 %v124, %v135
    %v137 = vperm.slane %v111, 0
    %v138 = vmul.f32 %v136, %v137
    %v139 = vperm.slane %v112, 0
    %v140 = vadd.f32 %v138, %v139
    %v141 = vld [vmem:[#allocation4] sm:$0xff]
    %v142 = vld [vmem:[#allocation4 + $0x8] sm:$0xff]
    %v143 = vld [vmem:[#allocation4 + $0x10] sm:$0xff]
    %v144 = vld [vmem:[#allocation4 + $0x18] sm:$0xff]
    %v145 = vld [vmem:[#allocation4 + $0x20] sm:$0xff]
    %v146 = vld [vmem:[#allocation4 + $0x28] sm:$0xff]
    %v147 = vld [vmem:[#allocation4 + $0x30] sm:$0xff]
    %v148 = vld [vmem:[#allocation4 + $0x38] sm:$0xff]
    %v149 = vld [vmem:[#allocation4 + $0x40] sm:$0xff]
    %v150 = vld [vmem:[#allocation4 + $0x48] sm:$0xff]
    %v151 = vld [vmem:[#allocation4 + $0x50] sm:$0xff]
    %v152 = vld [vmem:[#allocation4 + $0x58] sm:$0xff]
    %v153 = vld [vmem:[#allocation4 + $0x60] sm:$0xff]
    %v154 = vld [vmem:[#allocation4 + $0x68] sm:$0xff]
    %v155 = vld [vmem:[#allocation4 + $0x70] sm:$0xff]
    %v156 = vld [vmem:[#allocation4 + $0x78] sm:$0xff]
    %v157 = vld [vmem:[#allocation4 + $0x80] sm:$0x1]
    %v158 = vperm.slane %v157, 0
    %159 = vmatpush.msra.mxu0 %v156
    %160 = vmatpush.msra.mxu0 %v155
    %161 = vmatpush.msra.mxu0 %v154
    %162 = vmatpush.msra.mxu0 %v153
    %163 = vmatpush.msra.mxu0 %v152
    %164 = vmatpush.msra.mxu0 %v151
    %165 = vmatpush.msra.mxu0 %v150
    %166 = vmatpush.msra.mxu0 %v149
    %167 = vmatpush.msra.mxu0 %v148
    %168 = vmatpush.msra.mxu0 %v147
    %169 = vmatpush.msra.mxu0 %v146
    %170 = vmatpush.msra.mxu0 %v145
    %171 = vmatpush.msra.mxu0 %v144
    %172 = vmatpush.msra.mxu0 %v143
    %173 = vmatpush.msra.mxu0 %v142
    %174 = vmatpush.msra.mxu0 %v141
    %175 = vmatmul.f32.gmra.mxu0 %v140
    %v176 = vpop.f32.mrf.mxu0
    %v177 = vadd.f32 %v158, %v176
    %178 = vdwg.mxu0
    %179 = vst [vmem:[%s6] sm:$0xff] %v177
    %v180 = vld [vmem:[%s1] sm:$0xff]
    %v181 = vld [vmem:[%s1 + $0x8] sm:$0xff]
    %v182 = vld [vmem:[%s1 + $0x10] sm:$0xff]
    %v183 = vld [vmem:[%s1 + $0x18] sm:$0xff]
    %v184 = vld [vmem:[%s4] sm:$0xff]
    %v185 = vld [vmem:[%s4 + $0x8] sm:$0xff]
    %v186 = vld [vmem:[%s4 + $0x10] sm:$0xff]
    %v187 = vld [vmem:[%s4 + $0x18] sm:$0xff]
    %v188 = vld [vmem:[%s4 + $0x20] sm:$0x1]
    %v189 = vperm.slane %v188, 0
    %vm190 = vcmask 261120
    %v192 = vsel %vm190, %v180, 0
    %v195 = vsel %vm190, %v181, 0
    %v198 = vsel %vm190, %v182, 0
    %v201 = vsel %vm190, %v183, 0
    %203 = vmatpush.msra.mxu0 0.0
    %204 = vmatpush.msra.mxu0 0.0
    %205 = vmatpush.msra.mxu0 0.0
    %206 = vmatpush.msra.mxu0 0.0
    %207 = vmatpush.msra.mxu0 0.0
    %208 = vmatpush.msra.mxu0 0.0
    %209 = vmatpush.msra.mxu0 0.0
    %210 = vmatpush.msra.mxu0 0.0
    %211 = vmatpush.msra.mxu0 0.0
    %212 = vmatpush.msra.mxu0 0.0
    %213 = vmatpush.msra.mxu0 0.0
    %214 = vmatpush.msra.mxu0 0.0
    %215 = vmatpush.msra.mxu0 %v187
    %216 = vmatpush.msra.mxu0 %v186
    %217 = vmatpush.msra.mxu0 %v185
    %218 = vmatpush.msra.mxu0 %v184
    %219 = vmatmul.f32.gmra.mxu0 %v192
    %v220 = vpop.f32.mrf.mxu0
    %v221 = vadd.f32 %v189, %v220
    %222 = vmatmul.f32.gmra.mxu0 %v195
    %v223 = vpop.f32.mrf.mxu0
    %v224 = vadd.f32 %v189, %v223
    %225 = vmatmul.f32.gmra.mxu0 %v198
    %v226 = vpop.f32.mrf.mxu0
    %v227 = vadd.f32 %v189, %v226
    %228 = vmatmul.f32.gmra.mxu0 %v201
    %v229 = vpop.f32.mrf.mxu0
    %v230 = vadd.f32 %v189, %v229
    %231 = vdwg.mxu0
    %v232 = vld [vmem:[%s4 + $0x21] sm:$0x1]
    %v233 = vld [vmem:[%s4 + $0x22] sm:$0x1]
    %v234 = vmax.f32 %v221, 0.0
    %v235 = vmax.f32 %v224, 0.0
    %v236 = vmax.f32 %v227, 0.0
    %v237 = vmax.f32 %v230, 0.0
    %238 = vadd.xlane.f32.xlu0 %v234
    %v239 = vpop.xlane.xlu0 %238
    %240 = vadd.xlane.f32.xlu0 %v235
    %v241 = vpop.xlane.xlu0 %240
    %242 = vadd.xlane.f32.xlu0 %v236
    %v243 = vpop.xlane.xlu0 %242
    %244 = vadd.xlane.f32.xlu0 %v237
    %v245 = vpop.xlane.xlu0 %244
    %v246 = vmul.f32 %v239, 0.03125
    %v247 = vmul.f32 %v241, 0.03125
    %v248 = vmul.f32 %v243, 0.03125
    %v249 = vmul.f32 %v245, 0.03125
    %v250 = vmul.f32 %v234, %v234
    %v251 = vmul.f32 %v235, %v235
    %v252 = vmul.f32 %v236, %v236
    %v253 = vmul.f32 %v237, %v237
    %254 = vadd.xlane.f32.xlu0 %v250
    %v255 = vpop.xlane.xlu0 %254
    %256 = vadd.xlane.f32.xlu0 %v251
    %v257 = vpop.xlane.xlu0 %256
    %258 = vadd.xlane.f32.xlu0 %v252
    %v259 = vpop.xlane.xlu0 %258
    %260 = vadd.xlane.f32.xlu0 %v253
    %v261 = vpop.xlane.xlu0 %260
    %v262 = vmul.f32 %v255, 0.03125
    %v263 = vmul.f32 %v257, 0.03125
    %v264 = vmul.f32 %v259, 0.03125
    %v265 = vmul.f32 %v261, 0.03125
    %v266 = vmul.f32 %v246, %v246
    %v267 = vmul.f32 %v247, %v247
    %v268 = vmul.f32 %v248, %v248
    %v269 = vmul.f32 %v249, %v249
    %v270 = vsub.f32 %v262, %v266
    %v271 = vsub.f32 %v263, %v267
    %v272 = vsub.f32 %v264, %v268
    %v273 = vsub.f32 %v265, %v269
    %v274 = vmax.f32 %v270, 0.0
    %v275 = vmax.f32 %v271, 0.0
    %v276 = vmax.f32 %v272, 0.0
    %v277 = vmax.f32 %v273, 0.0
    %v278 = vsub.f32 %v234, %v246
    %v279 = vsub.f32 %v235, %v247
    %v280 = vsub.f32 %v236, %v248
    %v281 = vsub.f32 %v237, %v249
    %v282 = vadd.f32 %v274, 1e-05
    %v283 = vadd.f32 %v275, 1e-05
    %v284 = vadd.f32 %v276, 1e-05
    %v285 = vadd.f32 %v277, 1e-05
    %v286 = vrsqrt.pop %v282
    %v287 = vmul.f32 %v286, %v282
    %v288 = vmul.f32 %v287, %v286
    %v289 = vmul.f32 0.5, %v288
    %v290 = vsub.f32 1.5, %v289
    %v291 = vmul.f32 %v286, %v290
    %vm292 = vweird.f32 %v282
    %vm293 = vweird.f32 %v286
    %vm294 = vmor %vm292, %vm293
    %v295 = vsel %vm294, %v286, %v291
    %v296 = vrsqrt.pop %v283
    %v297 = vmul.f32 %v296, %v283
    %v298 = vmul.f32 %v297, %v296
    %v299 = vmul.f32 0.5, %v298
    %v300 = vsub.f32 1.5, %v299
    %v301 = vmul.f32 %v296, %v300
    %vm302 = vweird.f32 %v283
    %vm303 = vweird.f32 %v296
    %vm304 = vmor %vm302, %vm303
    %v305 = vsel %vm304, %v296, %v301
    %v306 = vrsqrt.pop %v284
    %v307 = vmul.f32 %v306, %v284
    %v308 = vmul.f32 %v307, %v306
    %v309 = vmul.f32 0.5, %v308
    %v310 = vsub.f32 1.5, %v309
    %v311 = vmul.f32 %v306, %v310
    %vm312 = vweird.f32 %v284
    %vm313 = vweird.f32 %v306
    %vm314 = vmor %vm312, %vm313
    %v315 = vsel %vm314, %v306, %v311
    %v316 = vrsqrt.pop %v285
    %v317 = vmul.f32 %v316, %v285
    %v318 = vmul.f32 %v317, %v316
    %v319 = vmul.f32 0.5, %v318
    %v320 = vsub.f32 1.5, %v319
    %v321 = vmul.f32 %v316, %v320
    %vm322 = vweird.f32 %v285
    %vm323 = vweird.f32 %v316
    %vm324 = vmor %vm322, %vm323
    %v325 = vsel %vm324, %v316, %v321
    %v326 = vmul.f32 %v278, %v295
    %v327 = vmul.f32 %v279, %v305
    %v328 = vmul.f32 %v280, %v315
    %v329 = vmul.f32 %v281, %v325
    %v330 = vperm.slane %v232, 0
    %v331 = vmul.f32 %v326, %v330
    %v332 = vmul.f32 %v327, %v330
    %v333 = vmul.f32 %v328, %v330
    %v334 = vmul.f32 %v329, %v330
    %v335 = vperm.slane %v233, 0
    %v336 = vadd.f32 %v331, %v335
    %v337 = vadd.f32 %v332, %v335
    %v338 = vadd.f32 %v333, %v335
    %v339 = vadd.f32 %v334, %v335
    %v340 = vld [vmem:[#allocation6] sm:$0xff]
    %v341 = vld [vmem:[#allocation6 + $0x8] sm:$0xff]
    %v342 = vld [vmem:[#allocation6 + $0x10] sm:$0xff]
    %v343 = vld [vmem:[#allocation6 + $0x18] sm:$0xff]
    %v344 = vld [vmem:[#allocation6 + $0x20] sm:$0xff]
    %v345 = vld [vmem:[#allocation6 + $0x28] sm:$0xff]
    %v346 = vld [vmem:[#allocation6 + $0x30] sm:$0xff]
    %v347 = vld [vmem:[#allocation6 + $0x38] sm:$0xff]
    %v348 = vld [vmem:[#allocation6 + $0x40] sm:$0xff]
    %v349 = vld [vmem:[#allocation6 + $0x48] sm:$0xff]
    %v350 = vld [vmem:[#allocation6 + $0x50] sm:$0xff]
    %v351 = vld [vmem:[#allocation6 + $0x58] sm:$0xff]
    %v352 = vld [vmem:[#allocation6 + $0x60] sm:$0xff]
    %v353 = vld [vmem:[#allocation6 + $0x68] sm:$0xff]
    %v354 = vld [vmem:[#allocation6 + $0x70] sm:$0xff]
    %v355 = vld [vmem:[#allocation6 + $0x78] sm:$0xff]
    %v356 = vld [vmem:[#allocation6 + $0x80] sm:$0x1]
    %v357 = vperm.slane %v356, 0
    %358 = vmatpush.msra.mxu0 %v355
    %359 = vmatpush.msra.mxu0 %v354
    %360 = vmatpush.msra.mxu0 %v353
    %361 = vmatpush.msra.mxu0 %v352
    %362 = vmatpush.msra.mxu0 %v351
    %363 = vmatpush.msra.mxu0 %v350
    %364 = vmatpush.msra.mxu0 %v349
    %365 = vmatpush.msra.mxu0 %v348
    %366 = vmatpush.msra.mxu0 %v347
    %367 = vmatpush.msra.mxu0 %v346
    %368 = vmatpush.msra.mxu0 %v345
    %369 = vmatpush.msra.mxu0 %v344
    %370 = vmatpush.msra.mxu0 %v343
    %371 = vmatpush.msra.mxu0 %v342
    %372 = vmatpush.msra.mxu0 %v341
    %373 = vmatpush.msra.mxu0 %v340
    %374 = vmatmul.f32.gmra.mxu0 %v336
    %v375 = vpop.f32.mrf.mxu0
    %v376 = vadd.f32 %v357, %v375
    %377 = vmatmul.f32.gmra.mxu0 %v337
    %v378 = vpop.f32.mrf.mxu0
    %v379 = vadd.f32 %v357, %v378
    %380 = vmatmul.f32.gmra.mxu0 %v338
    %v381 = vpop.f32.mrf.mxu0
    %v382 = vadd.f32 %v357, %v381
    %383 = vmatmul.f32.gmra.mxu0 %v339
    %v384 = vpop.f32.mrf.mxu0
    %v385 = vadd.f32 %v357, %v384
    %386 = vdwg.mxu0
    %387 = vst [vmem:[%s7] sm:$0xff] %v376
    %388 = vst [vmem:[%s7 + $0x8] sm:$0xff] %v379
    %389 = vst [vmem:[%s7 + $0x10] sm:$0xff] %v382
    %390 = vst [vmem:[%s7 + $0x18] sm:$0xff] %v385
    // Predicated region
    $region38: #{fused_prediction_forward.1} parent=1 // pred_check
      _
    $region39: #{fused_prediction_forward.1} parent=1 // pred_check_branch
      %392 = sbr.rel (0) target = $region41
    $region40: #{fused_prediction_forward.1} parent=1 // pred_region
      _
    $region41: #{fused_prediction_forward.1} parent=1 // pred_fallthru
      _
    // Predicated region
    $region42: #{fused_prediction_forward.1} parent=1 // pred_check
      _
    $region43: #{fused_prediction_forward.1} parent=1 // pred_check_branch
      %394 = sbr.rel (0) target = $region45
    $region44: #{fused_prediction_forward.1} parent=1 // pred_region
      _
    $region45: #{fused_prediction_forward.1} parent=1 // pred_fallthru
      _
    // Predicated region
    $region46: #{fused_prediction_forward.1} parent=1 // pred_check
      _
    $region47: #{fused_prediction_forward.1} parent=1 // pred_check_branch
      %396 = sbr.rel (0) target = $region49
    $region48: #{fused_prediction_forward.1} parent=1 // pred_region
      _
    $region49: #{fused_prediction_forward.1} parent=1 // pred_fallthru
      _
    // Predicated region
    $region50: #{fused_prediction_forward.1} parent=1 // pred_check
      _
    $region51: #{fused_prediction_forward.1} parent=1 // pred_check_branch
      %398 = sbr.rel (0) target = $region53
    $region52: #{fused_prediction_forward.1} parent=1 // pred_region
      _
    $region53: #{fused_prediction_forward.1} parent=1 // pred_fallthru
      _
    %399 = vsyncpa [#allocation3], 1
    %400 = vsyncpa [#allocation5], 1

</llo_original>
